<compile_context>
chip_gen: v7x
topology: tpu7x:2x2x1
jax: 0.10.0
libtpu: 0.0.40
codegen_flags: <defaults>
</compile_context>

<pallas_src>
import math

import jax
import jax.numpy as jnp
from jax import lax
from jax.experimental import pallas as pl
from jax.experimental.pallas import tpu as pltpu


def _round_up(v, m):
    return (v + m - 1) // m * m


# ---------------------------------------------------------------------------
# Kernel
# ---------------------------------------------------------------------------
def self_attn_kernel(x_ref, wqkv_ref, bqkv_ref, mask_ref, out_ref, wts_ref):
    """One grid step == one block of `bt` batch elements.

    x_ref:    (bt, L, D)   compute dtype (bf16 or f32)
    wqkv_ref: (D, 3*Dp)    compute dtype; [Wq | Wk | Wv], each zero-padded to Dp cols
    bqkv_ref: (1, 3*Dp)    f32, same padded layout
    mask_ref: (L, L)       f32 additive causal mask (0 / -999)
    out_ref:  (bt, L, Dp)  f32 (padded cols are zero; wrapper slices [..., :D])
    wts_ref:  (bt, L, L)   f32 attention weights
    """
    bt, L, D = x_ref.shape
    Dp = wqkv_ref.shape[1] // 3
    cdt = wqkv_ref.dtype
    scale = 1.0 / math.sqrt(D)

    # --- fused QKV projection over all bt*L rows (single MXU issue) ---
    x2 = x_ref[...].reshape(bt * L, D)                          # compute dtype
    qkv = lax.dot_general(
        x2, wqkv_ref[...],
        dimension_numbers=(((1,), (0,)), ((), ())),
        preferred_element_type=jnp.float32,
    ) + bqkv_ref[0]                                             # (bt*L, 3*Dp) f32

    # vreg-aligned (multiple-of-128) column slices; padded columns are exactly 0.
    q = qkv[:, 0 * Dp:1 * Dp].reshape(bt, L, Dp).astype(cdt)
    k = qkv[:, 1 * Dp:2 * Dp].reshape(bt, L, Dp).astype(cdt)
    v = qkv[:, 2 * Dp:3 * Dp].reshape(bt, L, Dp).astype(cdt)

    # --- scores: contract padded feature dim directly (zeros contribute 0) ---
    scores = lax.dot_general(
        q, k,
        dimension_numbers=(((2,), (2,)), ((0,), (0,))),
        preferred_element_type=jnp.float32,
    )                                                           # (bt, L, L) f32
    s = scores * scale + mask_ref[...][None, :, :]

    # --- numerically stable softmax (f32 elementwise; EUP reciprocal) ---
    s_max = jnp.max(s, axis=-1, keepdims=True)
    e = jnp.exp(s - s_max)
    wts = e * pl.reciprocal(jnp.sum(e, axis=-1, keepdims=True), approx=True)

    # --- attention output (padded V cols are zero -> padded out cols are zero) ---
    out_p = lax.dot_general(
        wts.astype(cdt), v,
        dimension_numbers=(((2,), (1,)), ((0,), (0,))),
        preferred_element_type=jnp.float32,
    )                                                           # (bt, L, Dp)

    out_ref[...] = out_p.astype(out_ref.dtype)                  # dense 128-lane rows
    wts_ref[...] = wts.astype(wts_ref.dtype)


# ---------------------------------------------------------------------------
# Parameter fusion (done ONCE, outside the forward path)
# ---------------------------------------------------------------------------
def fuse_qkv_params(params, compute_dtype=jnp.bfloat16):
    """Fuse Wq|Wk|Wv into one (D, 3*Dp) slab with per-projection zero padding
    to Dp = round_up(D, 128) so in-kernel Q/K/V slices are 128-lane aligned."""
    D = params["wq"].shape[0]
    Dp = _round_up(D, 128)
    pad = ((0, 0), (0, Dp - D))
    wqkv = jnp.concatenate(
        [jnp.pad(params["wq"], pad), jnp.pad(params["wk"], pad),
         jnp.pad(params["wv"], pad)], axis=1
    ).astype(compute_dtype)                                     # (D, 3*Dp)
    bqkv = jnp.concatenate(
        [jnp.pad(params["bq"], pad), jnp.pad(params["bk"], pad),
         jnp.pad(params["bv"], pad)], axis=1
    ).astype(jnp.float32)                                       # (1, 3*Dp)
    return wqkv, bqkv


# ---------------------------------------------------------------------------
# VMEM sizing helpers
# ---------------------------------------------------------------------------
def _step_vmem_bytes(bt, L, D, Dp, cdt_bytes):
    """Rough per-grid-step VMEM footprint (double-buffered blocks + temps)."""
    m = bt * L
    streamed = 2 * (m * D * cdt_bytes       # x block
                    + m * Dp * 4            # out block (padded)
                    + m * L * 4)            # wts block
    resident = 2 * (D * 3 * Dp * cdt_bytes + 3 * Dp * 4 + L * L * 4)
    temps = (m * 3 * Dp * 4                 # qkv f32
             + 3 * m * Dp * cdt_bytes       # q/k/v casts
             + 5 * m * L * 4                # scores / exp / wts f32 temps
             + m * Dp * 4)                  # f32 output temp
    return streamed + resident + temps


def _pick_batch_block(B, L, D, Dp, cdt_bytes, budget):
    """Largest divisor of B whose per-step footprint fits `budget`."""
    divisors = sorted((d for d in range(1, B + 1) if B % d == 0), reverse=True)
    for bt in divisors:
        if _step_vmem_bytes(bt, L, D, Dp, cdt_bytes) <= budget:
            # Prefer >= 2 grid steps (feeds both v7x TensorCores) only if the
            # QKV GEMM keeps a healthy M (= bt*L >= 256) per step.
            if bt == B and B % 2 == 0:
                half = B // 2
                if half * L >= 256 and _step_vmem_bytes(half, L, D, Dp, cdt_bytes) <= budget:
                    return half
            return bt
    return 1


# ---------------------------------------------------------------------------
# Forward
# ---------------------------------------------------------------------------
def self_attn_forward(x, wqkv, bqkv, *, batch_block=None):
    """x: (B, L, D) f32.  wqkv/bqkv from fuse_qkv_params.  Returns (out, wts)."""
    B, L, D = x.shape
    Dp = wqkv.shape[1] // 3
    assert wqkv.shape == (D, 3 * Dp) and Dp >= D
    compute_dtype = wqkv.dtype
    cdt_bytes = jnp.dtype(compute_dtype).itemsize

    # Size against the actual device VMEM (64 MiB on v7x, 128 MiB on v5e/v6e).
    try:
        vmem_cap = int(pltpu.get_tpu_info().vmem_capacity_bytes)
    except Exception:
        vmem_cap = 64 * 1024 * 1024   # conservative fallback (v7x per-TC)
    budget = int(vmem_cap * 0.7)

    bt = batch_block if batch_block is not None else _pick_batch_block(
        B, L, D, Dp, cdt_bytes, budget)
    assert B % bt == 0, "batch must be divisible by batch_block"
    nb = B // bt

    vmem_limit = int(min(vmem_cap,
                         max(32 * 1024 * 1024,
                             2 * _step_vmem_bytes(bt, L, D, Dp, cdt_bytes))))

    # Cast x to the matmul compute dtype here (halves the x HBM->VMEM DMA).
    x_c = x.astype(compute_dtype)

    # Additive mask (matches triu(ones, diagonal=1) * -999), built once per trace.
    row = jnp.arange(L)[:, None]
    col = jnp.arange(L)[None, :]
    mask = jnp.where(col > row, jnp.float32(-999.0), jnp.float32(0.0))   # (L, L)

    grid_spec = pltpu.PrefetchScalarGridSpec(
        num_scalar_prefetch=0,
        grid=(nb,),
        in_specs=[
            pl.BlockSpec((bt, L, D), lambda b: (b, 0, 0)),     # x block
            pl.BlockSpec((D, 3 * Dp), lambda b: (0, 0)),       # fused Wqkv (resident)
            pl.BlockSpec((1, 3 * Dp), lambda b: (0, 0)),       # fused bias (resident)
            pl.BlockSpec((L, L), lambda b: (0, 0)),            # mask (resident)
        ],
        out_specs=[
            pl.BlockSpec((bt, L, Dp), lambda b: (b, 0, 0)),    # lane-dense out (padded)
            pl.BlockSpec((bt, L, L), lambda b: (b, 0, 0)),     # wts
        ],
    )

    cost = pl.CostEstimate(
        flops=2 * B * L * D * (3 * Dp) + 4 * B * L * L * Dp,
        transcendentals=B * L * (L + 1),
        bytes_accessed=(x_c.size * cdt_bytes
                        + wqkv.size * cdt_bytes
                        + bqkv.size * 4 + mask.size * 4
                        + B * L * Dp * 4 + B * L * L * 4),
    )

    out_pad, wts = pl.pallas_call(
        self_attn_kernel,
        out_shape=(
            # TODO(synk): emit bf16 here if the consumer tolerates it — halves
            # the dominant wts HBM writeback for large L.
            jax.ShapeDtypeStruct((B, L, Dp), jnp.float32),
            jax.ShapeDtypeStruct((B, L, L), jnp.float32),
        ),
        grid_spec=grid_spec,
        compiler_params=pltpu.CompilerParams(
            dimension_semantics=("parallel",),
            vmem_limit_bytes=vmem_limit,
        ),
        cost_estimate=cost,
    )(x_c, wqkv, bqkv, mask)

    # TODO(synk): for large L, tile the attention flash-style (KV axis last,
    # "arbitrary" semantics, per-tile iota-built mask) so the (L, L) scores
    # never fully materialize — unnecessary at these shapes.
    return out_pad[..., :D], wts


# ---------------------------------------------------------------------------
# Reference + test harness
# ---------------------------------------------------------------------------
def _reference_forward(x, p):
    """Pure-JAX f32 reference matching the PyTorch SelfAttnHead forward."""
    B, L, d = x.shape
    q = x @ p["wq"] + p["bq"][0]
    k = x @ p["wk"] + p["bk"][0]
    v = x @ p["wv"] + p["bv"][0]
    row = jnp.arange(L)[:, None]
    col = jnp.arange(L)[None, :]
    mask = jnp.where(col > row, -999.0, 0.0)
    s = jnp.einsum("bld,bmd->blm", q, k) / (d ** 0.5) + mask
    wts = jax.nn.softmax(s, axis=-1)
    out = jnp.einsum("blm,bmd->bld", wts, v)
    return out, wts


def make_params(key, embed_dim):
    D = embed_dim
    keys = jax.random.split(key, 6)
    s = 0.1
    return {
        "wq": s * jax.random.normal(keys[0], (D, D), jnp.float32),
        "bq": s * jax.random.normal(keys[1], (1, D), jnp.float32),
        "wk": s * jax.random.normal(keys[2], (D, D), jnp.float32),
        "bk": s * jax.random.normal(keys[3], (1, D), jnp.float32),
        "wv": s * jax.random.normal(keys[4], (D, D), jnp.float32),
        "bv": s * jax.random.normal(keys[5], (1, D), jnp.float32),
    }


if __name__ == "__main__":
    B, L, D = 2, 8, 32
    root = jax.random.PRNGKey(0)
    k_x, k_p = jax.random.split(root)
    x = jax.random.normal(k_x, (B, L, D), jnp.float32)
    params = make_params(k_p, D)

    ref_out, ref_wts = _reference_forward(x, params)

    fwd = jax.jit(self_attn_forward, static_argnames=("batch_block",))

    # f32-matmul path: validates kernel structure tightly (only the approximate
    # EUP reciprocal differs from the reference).
    wqkv32, bqkv32 = fuse_qkv_params(params, compute_dtype=jnp.float32)
    out32, wts32 = fwd(x, wqkv32, bqkv32)
    jax.block_until_ready((out32, wts32))
    assert out32.shape == (B, L, D) and wts32.shape == (B, L, L)
    assert jnp.allclose(out32, ref_out, atol=5e-3, rtol=5e-3)
    assert jnp.allclose(wts32, ref_wts, atol=3e-3)

    # bf16-matmul path (fast path on v6e/v7x): looser tolerance for bf16
    # operand rounding with f32 accumulation.
    wqkv16, bqkv16 = fuse_qkv_params(params, compute_dtype=jnp.bfloat16)
    out, wts = fwd(x, wqkv16, bqkv16)
    jax.block_until_ready((out, wts))
    assert jnp.allclose(out, ref_out, atol=3e-2, rtol=3e-2)
    assert jnp.allclose(wts, ref_wts, atol=1e-2)

    print("KERNEL_OK")
</pallas_src>

<mosaic_0001>
module attributes {stable_mosaic.version = 11 : i64} {
  func.func @self_attn_kernel(%arg0: i32, %arg1: memref<2x8x32xf32, #tpu.memory_space<vmem>>, %arg2: memref<32x384xf32, #tpu.memory_space<vmem>>, %arg3: memref<1x384xf32, #tpu.memory_space<vmem>>, %arg4: memref<8x8xf32, #tpu.memory_space<vmem>>, %arg5: memref<2x8x128xf32, #tpu.memory_space<vmem>>, %arg6: memref<2x8x8xf32, #tpu.memory_space<vmem>>) attributes {dimension_semantics = [#tpu.dimension_semantics<parallel>], iteration_bounds = array<i64: 1>, scalar_prefetch = 0 : i64, scratch_operands = 0 : i64, tpu.core_type = #tpu.core_type<tc>, window_params = [{transform_indices = @transform_0, window_bounds = array<i64: 2, 8, 32>}, {pipeline_mode = #tpu.pipeline_mode<synchronous>, transform_indices = @transform_1, window_bounds = array<i64: 32, 384>}, {pipeline_mode = #tpu.pipeline_mode<synchronous>, transform_indices = @transform_2, window_bounds = array<i64: 1, 384>}, {pipeline_mode = #tpu.pipeline_mode<synchronous>, transform_indices = @transform_3, window_bounds = array<i64: 8, 8>}, {transform_indices = @transform_4, window_bounds = array<i64: 2, 8, 128>}, {transform_indices = @transform_5, window_bounds = array<i64: 2, 8, 8>}]} {
    %c0 = arith.constant 0 : index
    %c0_0 = arith.constant 0 : index
    %c0_1 = arith.constant 0 : index
    %0 = vector.load %arg1[%c0, %c0_0, %c0_1] : memref<2x8x32xf32, #tpu.memory_space<vmem>>, vector<2x8x32xf32>
    %1 = vector.shape_cast %0 : vector<2x8x32xf32> to vector<16x32xf32>
    %c0_2 = arith.constant 0 : index
    %c0_3 = arith.constant 0 : index
    %2 = vector.load %arg2[%c0_2, %c0_3] : memref<32x384xf32, #tpu.memory_space<vmem>>, vector<32x384xf32>
    %cst = arith.constant dense<0.000000e+00> : vector<16x384xf32>
    %3 = tpu.matmul %1, %2, %cst {dimension_numbers = #tpu.dot_dimension_numbers<[1], [0], [0], [1], [0, 0, 1, 1], [], []>} : vector<16x32xf32>, vector<32x384xf32>, vector<16x384xf32> -> vector<16x384xf32>
    %c0_4 = arith.constant 0 : index
    %c0_5 = arith.constant 0 : index
    %4 = vector.load %arg3[%c0_4, %c0_5] : memref<1x384xf32, #tpu.memory_space<vmem>>, vector<1x384xf32>
    %5 = vector.shape_cast %4 : vector<1x384xf32> to vector<384xf32>
    %6 = vector.shape_cast %5 : vector<384xf32> to vector<1x384xf32>
    %7 = vector.broadcast %6 : vector<1x384xf32> to vector<16x384xf32>
    %8 = arith.addf %3, %7 : vector<16x384xf32>
    %9 = vector.extract_strided_slice %8 {offsets = [0, 0], sizes = [16, 128], strides = [1, 1]} : vector<16x384xf32> to vector<16x128xf32>
    %10 = vector.shape_cast %9 : vector<16x128xf32> to vector<2x8x128xf32>
    %11 = vector.extract_strided_slice %8 {offsets = [0, 128], sizes = [16, 128], strides = [1, 1]} : vector<16x384xf32> to vector<16x128xf32>
    %12 = vector.shape_cast %11 : vector<16x128xf32> to vector<2x8x128xf32>
    %13 = vector.extract_strided_slice %8 {offsets = [0, 256], sizes = [16, 128], strides = [1, 1]} : vector<16x384xf32> to vector<16x128xf32>
    %14 = vector.shape_cast %13 : vector<16x128xf32> to vector<2x8x128xf32>
    %cst_6 = arith.constant dense<0.000000e+00> : vector<2x8x8xf32>
    %15 = tpu.matmul %10, %12, %cst_6 {dimension_numbers = #tpu.dot_dimension_numbers<[2], [2], [1], [1], [0, 0, 0, 1, 1, 1], [0], [0]>} : vector<2x8x128xf32>, vector<2x8x128xf32>, vector<2x8x8xf32> -> vector<2x8x8xf32>
    %cst_7 = arith.constant 0.176776692 : f32
    %16 = vector.broadcast %cst_7 : f32 to vector<2x8x8xf32>
    %17 = arith.mulf %15, %16 : vector<2x8x8xf32>
    %c0_8 = arith.constant 0 : index
    %c0_9 = arith.constant 0 : index
    %18 = vector.load %arg4[%c0_8, %c0_9] : memref<8x8xf32, #tpu.memory_space<vmem>>, vector<8x8xf32>
    %19 = vector.shape_cast %18 : vector<8x8xf32> to vector<1x8x8xf32>
    %20 = vector.broadcast %19 : vector<1x8x8xf32> to vector<2x8x8xf32>
    %21 = arith.addf %17, %20 : vector<2x8x8xf32>
    %cst_10 = arith.constant dense<0xFF800000> : vector<2x8xf32>
    %22 = vector.multi_reduction <maximumf>, %21, %cst_10 [2] : vector<2x8x8xf32> to vector<2x8xf32>
    %23 = vector.shape_cast %22 : vector<2x8xf32> to vector<2x8x1xf32>
    %24 = vector.broadcast %23 : vector<2x8x1xf32> to vector<2x8x8xf32>
    %25 = arith.subf %21, %24 : vector<2x8x8xf32>
    %26 = math.exp %25 : vector<2x8x8xf32>
    %cst_11 = arith.constant dense<0.000000e+00> : vector<2x8xf32>
    %27 = vector.multi_reduction <add>, %26, %cst_11 [2] : vector<2x8x8xf32> to vector<2x8xf32>
    %28 = vector.shape_cast %27 : vector<2x8xf32> to vector<2x8x1xf32>
    %29 = tpu.reciprocal %28 {approx = true} : vector<2x8x1xf32> -> vector<2x8x1xf32>
    %30 = vector.broadcast %29 : vector<2x8x1xf32> to vector<2x8x8xf32>
    %31 = arith.mulf %26, %30 : vector<2x8x8xf32>
    %cst_12 = arith.constant dense<0.000000e+00> : vector<2x8x128xf32>
    %32 = tpu.matmul %31, %14, %cst_12 {dimension_numbers = #tpu.dot_dimension_numbers<[2], [1], [1], [2], [0, 0, 0, 1, 1, 2], [0], [0]>} : vector<2x8x8xf32>, vector<2x8x128xf32>, vector<2x8x128xf32> -> vector<2x8x128xf32>
    %c0_13 = arith.constant 0 : index
    %c0_14 = arith.constant 0 : index
    %c0_15 = arith.constant 0 : index
    %33 = vector.load %arg5[%c0_13, %c0_14, %c0_15] : memref<2x8x128xf32, #tpu.memory_space<vmem>>, vector<2x8x128xf32>
    tpu.vector_store %arg5[%c0_13, %c0_14, %c0_15], %32 {strides = array<i32>} : memref<2x8x128xf32, #tpu.memory_space<vmem>>, vector<2x8x128xf32>,
    %c0_16 = arith.constant 0 : index
    %c0_17 = arith.constant 0 : index
    %c0_18 = arith.constant 0 : index
    %34 = vector.load %arg6[%c0_16, %c0_17, %c0_18] : memref<2x8x8xf32, #tpu.memory_space<vmem>>, vector<2x8x8xf32>
    tpu.vector_store %arg6[%c0_16, %c0_17, %c0_18], %31 {strides = array<i32>} : memref<2x8x8xf32, #tpu.memory_space<vmem>>, vector<2x8x8xf32>,
    return
  }
  func.func @transform_0(%arg0: i32) -> (i32, i32, i32) {
    %c0_i32 = arith.constant 0 : i32
    %c0_i32_0 = arith.constant 0 : i32
    %c0_i32_1 = arith.constant 0 : i32
    return %arg0, %c0_i32, %c0_i32_0 : i32, i32, i32
  }
  func.func @transform_1(%arg0: i32) -> (i32, i32) {
    %c0_i32 = arith.constant 0 : i32
    %c0_i32_0 = arith.constant 0 : i32
    %c0_i32_1 = arith.constant 0 : i32
    return %c0_i32, %c0_i32_0 : i32, i32
  }
  func.func @transform_2(%arg0: i32) -> (i32, i32) {
    %c0_i32 = arith.constant 0 : i32
    %c0_i32_0 = arith.constant 0 : i32
    %c0_i32_1 = arith.constant 0 : i32
    return %c0_i32, %c0_i32_0 : i32, i32
  }
  func.func @transform_3(%arg0: i32) -> (i32, i32) {
    %c0_i32 = arith.constant 0 : i32
    %c0_i32_0 = arith.constant 0 : i32
    %c0_i32_1 = arith.constant 0 : i32
    return %c0_i32, %c0_i32_0 : i32, i32
  }
  func.func @transform_4(%arg0: i32) -> (i32, i32, i32) {
    %c0_i32 = arith.constant 0 : i32
    %c0_i32_0 = arith.constant 0 : i32
    %c0_i32_1 = arith.constant 0 : i32
    return %arg0, %c0_i32, %c0_i32_0 : i32, i32, i32
  }
  func.func @transform_5(%arg0: i32) -> (i32, i32, i32) {
    %c0_i32 = arith.constant 0 : i32
    %c0_i32_0 = arith.constant 0 : i32
    %c0_i32_1 = arith.constant 0 : i32
    return %arg0, %c0_i32, %c0_i32_0 : i32, i32, i32
  }
}

</mosaic_0001>

<llo_original>
// kernel: self_attn_forward.1
$region0: #{self_attn_forward.1}
  #allocation0 [shape = 'u32[]', space=smem, size = 0x4, offset = 0x4, fixed_abs, tag = 'smem constant byte address 0x4 - core index']
  #allocation1 [shape = 'u32[144,128]{1,0:T(1,128)}', space=vmem, size = 0x12000, scoped, tag = 'internal scratch']
  %s0 = inlined_call_operand.hbm [shape: f32[2,8,32], index: 0, kind: input, shape index: {}]
  %s1 = inlined_call_operand.hbm [shape: f32[32,384], index: 1, kind: input, shape index: {}]
  %s2 = inlined_call_operand.vmem [shape: f32[1,384], index: 2, kind: input, shape index: {}]
  %s3 = inlined_call_operand.vmem [shape: f32[8,8], index: 3, kind: input, shape index: {}]
  %s4 = inlined_call_operand.hbm [shape: f32[2,8,128], index: 4, kind: output, shape index: {0}]
  %s5 = inlined_call_operand.hbm [shape: f32[2,8,8], index: 5, kind: output, shape index: {1}]
  %6 = xla_tuple %s4, %s5
  %s7 = sld [smem:[#allocation0]]
  $region42: #{self_attn_forward.1} parent=0
    _
  %s9 = ssub.s32 1, %s7
  %s10 = scalar_select 0, %s9, %s7
  $region1: #{self_attn_forward.1} parent=0
    #allocation2 [shape = 'u8[8192]{0}', space=vmem, size = 0x2000, scoped, tag = 'input window, operand 0, single buffered']
    #allocation3 [shape = 's32[1]{0}', space=sflag, size = 0x4, scoped, tag = 'scoped memory for self_attn_forward.1']
    #allocation4 [shape = 's32[1]{0}', space=sflag, size = 0x4, scoped, tag = 'scoped memory for self_attn_forward.1']
    #allocation5 [shape = 'u8[49152]{0}', space=vmem, size = 0xc000, scoped, tag = 'input window, operand 1, single buffered']
    #allocation6 [shape = 's32[1]{0}', space=sflag, size = 0x4, scoped, tag = 'scoped memory for self_attn_forward.1']
    #allocation7 [shape = 'u8[8192]{0}', space=vmem, size = 0x2000, scoped, tag = 'output window, operand 0, single buffered']
    #allocation8 [shape = 'u8[8192]{0}', space=vmem, size = 0x2000, scoped, tag = 'output window, operand 1, single buffered']
    #allocation9 [shape = 's32[1]{0}', space=sflag, size = 0x4, scoped, tag = 'scoped memory for self_attn_forward.1']
    %11 = vsyncpa [#allocation3], 0
    %12 = vsyncpa [#allocation6], 0
    %13 = vsyncpa [#allocation4], 0
    %14 = vsyncpa [#allocation9], 0
    // Predicated region
    $region2: #{self_attn_forward.1} parent=1 // pred_check
      _
    $region3: #{self_attn_forward.1} parent=1 // pred_check_branch
      %16 = sbr.rel (0) target = $region5
    $region4: #{self_attn_forward.1} parent=1 // pred_region
      %s18 = ssub.s32 256, 256
      %19 = vsyncadd [#allocation3], %s18
      %s20 = sshll.u32 [#allocation2], 4
      %s21 = int_to_ptr.vmem [resolvable:$true] %s20
      %26 = dma.hbm_to_vmem [thread:$0]  %s0, 256, %s21, [#allocation3], 128, 128, 8
    $region5: #{self_attn_forward.1} parent=1 // pred_fallthru
      _
    // Predicated region
    $region6: #{self_attn_forward.1} parent=1 // pred_check
      _
    $region7: #{self_attn_forward.1} parent=1 // pred_check_branch
      %28 = sbr.rel (0) target = $region9
    $region8: #{self_attn_forward.1} parent=1 // pred_region
      %s30 = ssub.s32 1536, 1536
      %31 = vsyncadd [#allocation6], %s30
      %s32 = sshll.u32 [#allocation5], 4
      %s33 = int_to_ptr.vmem [resolvable:$true] %s32
      %38 = dma.hbm_to_vmem [thread:$0]  %s1, 1536, %s33, [#allocation6], 384, 384, 24
    $region9: #{self_attn_forward.1} parent=1 // pred_fallthru
      _
    // Predicated region
    $region10: #{self_attn_forward.1} parent=1 // pred_check
      _
    $region11: #{self_attn_forward.1} parent=1 // pred_check_branch
      %40 = sbr.rel (0) target = $region13
    $region12: #{self_attn_forward.1} parent=1 // pred_region
      _
    $region13: #{self_attn_forward.1} parent=1 // pred_fallthru
      _
    // Predicated region
    $region14: #{self_attn_forward.1} parent=1 // pred_check
      _
    $region15: #{self_attn_forward.1} parent=1 // pred_check_branch
      %42 = sbr.rel (0) target = $region17
    $region16: #{self_attn_forward.1} parent=1 // pred_region
      _
    $region17: #{self_attn_forward.1} parent=1 // pred_fallthru
      _
    // Predicated region
    $region18: #{self_attn_forward.1} parent=1 // pred_check
      _
    $region19: #{self_attn_forward.1} parent=1 // pred_check_branch
      %44 = sbr.rel (0) target = $region21
    $region20: #{self_attn_forward.1} parent=1 // pred_region
      %45 = dma.done [#allocation3], 256
    $region21: #{self_attn_forward.1} parent=1 // pred_fallthru
      _
    // Predicated region
    $region22: #{self_attn_forward.1} parent=1 // pred_check
      _
    $region23: #{self_attn_forward.1} parent=1 // pred_check_branch
      %47 = sbr.rel (0) target = $region25
    $region24: #{self_attn_forward.1} parent=1 // pred_region
      %48 = dma.done [#allocation6], 1536
    $region25: #{self_attn_forward.1} parent=1 // pred_fallthru
      _
    %v49 = vld [vmem:[#allocation2] sm:$0xff]
    %v50 = vld [vmem:[#allocation2 + $0x8] sm:$0xff]
    %v51 = vld [vmem:[#allocation5] sm:$0xff]
    %v52 = vld [vmem:[#allocation5 + $0x8] sm:$0xff]
    %v53 = vld [vmem:[#allocation5 + $0x10] sm:$0xff]
    %v54 = vld [vmem:[#allocation5 + $0x18] sm:$0xff]
    %v55 = vld [vmem:[#allocation5 + $0x20] sm:$0xff]
    %v56 = vld [vmem:[#allocation5 + $0x28] sm:$0xff]
    %v57 = vld [vmem:[#allocation5 + $0x30] sm:$0xff]
    %v58 = vld [vmem:[#allocation5 + $0x38] sm:$0xff]
    %v59 = vld [vmem:[#allocation5 + $0x40] sm:$0xff]
    %v60 = vld [vmem:[#allocation5 + $0x48] sm:$0xff]
    %v61 = vld [vmem:[#allocation5 + $0x50] sm:$0xff]
    %v62 = vld [vmem:[#allocation5 + $0x58] sm:$0xff]
    %v63 = vld [vmem:[%s2] sm:$0x7]
    %v65 = vlaneseq
    %v66 = vshrl.u32 %v65, 7
    %v67 = vsub.s32 0, %v66
    %v68 = vrot.slane %v63, %v67
    %v69 = vlaneseq
    %v70 = vshrl.u32 %v69, 7
    %v71 = vsub.s32 1, %v70
    %v72 = vrot.slane %v63, %v71
    %v73 = vlaneseq
    %v74 = vshrl.u32 %v73, 7
    %v75 = vsub.s32 2, %v74
    %v76 = vrot.slane %v63, %v75
    %vm80 = vcmask 261120
    %v82 = vsel %vm80, %v49, 0
    %v85 = vsel %vm80, %v50, 0
    %87 = vmatprep.subr.mxu0 %v52
    %88 = vmatpush1.msra.mxu0 %v51
    %89 = vmatprep.subr.mxu0 %v55
    %90 = vmatpush1.msra.mxu0 %v54
    %91 = vmatprep.subr.mxu0 %v58
    %92 = vmatpush1.msra.mxu0 %v57
    %93 = vmatprep.subr.mxu0 %v61
    %94 = vmatpush1.msra.mxu0 %v60
    %95 = vmatprep.subr.mxu0 0.0
    %96 = vmatpush1.msra.mxu0 0.0
    %97 = vmatprep.subr.mxu0 0.0
    %98 = vmatpush1.msra.mxu0 0.0
    %99 = vmatprep.subr.mxu0 0.0
    %100 = vmatpush1.msra.mxu0 0.0
    %101 = vmatprep.subr.mxu0 0.0
    %102 = vmatpush1.msra.mxu0 0.0
    %103 = vmatprep.subr.mxu0 0.0
    %104 = vmatpush1.msra.mxu0 0.0
    %105 = vmatprep.subr.mxu0 0.0
    %106 = vmatpush1.msra.mxu0 0.0
    %107 = vmatprep.subr.mxu0 0.0
    %108 = vmatpush1.msra.mxu0 0.0
    %109 = vmatprep.subr.mxu0 0.0
    %110 = vmatpush1.msra.mxu0 0.0
    %111 = vmatprep.subr.mxu0 0.0
    %112 = vmatpush1.msra.mxu0 0.0
    %113 = vmatprep.subr.mxu0 0.0
    %114 = vmatpush1.msra.mxu0 0.0
    %115 = vmatprep.subr.mxu0 0.0
    %116 = vmatpush1.msra.mxu0 0.0
    %117 = vmatprep.subr.mxu0 0.0
    %118 = vmatpush1.msra.mxu0 0.0
    %119 = vmatprep.subr.mxu0 0.0
    %120 = vmatpush1.msra.mxu0 0.0
    %121 = vmatprep.subr.mxu0 0.0
    %122 = vmatpush1.msra.mxu0 0.0
    %123 = vmatprep.subr.mxu0 0.0
    %124 = vmatpush1.msra.mxu0 0.0
    %125 = vmatprep.subr.mxu0 0.0
    %126 = vmatpush1.msra.mxu0 0.0
    %127 = vmatprep.subr.mxu0 0.0
    %128 = vmatpush1.msra.mxu0 0.0
    %129 = vmatprep.subr.mxu0 0.0
    %130 = vmatpush1.msra.mxu0 0.0
    %131 = vmatprep.subr.mxu0 0.0
    %132 = vmatpush1.msra.mxu0 0.0
    %133 = vmatprep.subr.mxu0 0.0
    %134 = vmatpush1.msra.mxu0 0.0
    %135 = vmatprep.subr.mxu0 0.0
    %136 = vmatpush1.msra.mxu0 0.0
    %137 = vmatprep.subr.mxu0 0.0
    %138 = vmatpush1.msra.mxu0 0.0
    %139 = vmatprep.subr.mxu0 0.0
    %140 = vmatpush1.msra.mxu0 0.0
    %141 = vmatprep.subr.mxu0 0.0
    %142 = vmatpush1.msra.mxu0 0.0
    %143 = vmatprep.subr.mxu0 0.0
    %144 = vmatpush1.msra.mxu0 0.0
    %145 = vmatprep.subr.mxu0 0.0
    %146 = vmatpush1.msra.mxu0 0.0
    %147 = vmatprep.subr.mxu0 0.0
    %148 = vmatpush1.msra.mxu0 0.0
    %149 = vmatprep.subr.mxu0 0.0
    %150 = vmatpush1.msra.mxu0 0.0
    %151 = vmatprep.mubr.f32.mxu0 0.0
    %152 = vmatmul.mubr.f32.gmra.mrb[0].mxu0 %v82
    %v153 = vpop.f32.mrb[0].mxu0
    %v154 = vadd.f32 %v68, %v153
    %v155 = vpop.f32.mrb[0].mxu0
    %v156 = vadd.f32 %v72, %v155
    %157 = vmatprep.mubr.f32.mxu0 0.0
    %158 = vmatmul.mubr.f32.gmra.mrb[0].mxu0 %v85
    %v159 = vpop.f32.mrb[0].mxu0
    %v160 = vadd.f32 %v68, %v159
    %v161 = vpop.f32.mrb[0].mxu0
    %v162 = vadd.f32 %v72, %v161
    %163 = vdwg.mxu0
    %164 = vmatprep.subr.mxu0 0.0
    %165 = vmatpush1.msra.mxu0 %v53
    %166 = vmatprep.subr.mxu0 0.0
    %167 = vmatpush1.msra.mxu0 %v56
    %168 = vmatprep.subr.mxu0 0.0
    %169 = vmatpush1.msra.mxu0 %v59
    %170 = vmatprep.subr.mxu0 0.0
    %171 = vmatpush1.msra.mxu0 %v62
    %172 = vmatprep.subr.mxu0 0.0
    %173 = vmatpush1.msra.mxu0 0.0
    %174 = vmatprep.subr.mxu0 0.0
    %175 = vmatpush1.msra.mxu0 0.0
    %176 = vmatprep.subr.mxu0 0.0
    %177 = vmatpush1.msra.mxu0 0.0
    %178 = vmatprep.subr.mxu0 0.0
    %179 = vmatpush1.msra.mxu0 0.0
    %180 = vmatprep.subr.mxu0 0.0
    %181 = vmatpush1.msra.mxu0 0.0
    %182 = vmatprep.subr.mxu0 0.0
    %183 = vmatpush1.msra.mxu0 0.0
    %184 = vmatprep.subr.mxu0 0.0
    %185 = vmatpush1.msra.mxu0 0.0
    %186 = vmatprep.subr.mxu0 0.0
    %187 = vmatpush1.msra.mxu0 0.0
    %188 = vmatprep.subr.mxu0 0.0
    %189 = vmatpush1.msra.mxu0 0.0
    %190 = vmatprep.subr.mxu0 0.0
    %191 = vmatpush1.msra.mxu0 0.0
    %192 = vmatprep.subr.mxu0 0.0
    %193 = vmatpush1.msra.mxu0 0.0
    %194 = vmatprep.subr.mxu0 0.0
    %195 = vmatpush1.msra.mxu0 0.0
    %196 = vmatprep.subr.mxu0 0.0
    %197 = vmatpush1.msra.mxu0 0.0
    %198 = vmatprep.subr.mxu0 0.0
    %199 = vmatpush1.msra.mxu0 0.0
    %200 = vmatprep.subr.mxu0 0.0
    %201 = vmatpush1.msra.mxu0 0.0
    %202 = vmatprep.subr.mxu0 0.0
    %203 = vmatpush1.msra.mxu0 0.0
    %204 = vmatprep.subr.mxu0 0.0
    %205 = vmatpush1.msra.mxu0 0.0
    %206 = vmatprep.subr.mxu0 0.0
    %207 = vmatpush1.msra.mxu0 0.0
    %208 = vmatprep.subr.mxu0 0.0
    %209 = vmatpush1.msra.mxu0 0.0
    %210 = vmatprep.subr.mxu0 0.0
    %211 = vmatpush1.msra.mxu0 0.0
    %212 = vmatprep.subr.mxu0 0.0
    %213 = vmatpush1.msra.mxu0 0.0
    %214 = vmatprep.subr.mxu0 0.0
    %215 = vmatpush1.msra.mxu0 0.0
    %216 = vmatprep.subr.mxu0 0.0
    %217 = vmatpush1.msra.mxu0 0.0
    %218 = vmatprep.subr.mxu0 0.0
    %219 = vmatpush1.msra.mxu0 0.0
    %220 = vmatprep.subr.mxu0 0.0
    %221 = vmatpush1.msra.mxu0 0.0
    %222 = vmatprep.subr.mxu0 0.0
    %223 = vmatpush1.msra.mxu0 0.0
    %224 = vmatprep.subr.mxu0 0.0
    %225 = vmatpush1.msra.mxu0 0.0
    %226 = vmatprep.subr.mxu0 0.0
    %227 = vmatpush1.msra.mxu0 0.0
    %228 = vmatprep.mubr.f32.mxu0 0.0
    %229 = vmatmul.mubr.f32.gmra.mrb[0].mxu0 %v82
    %v230 = vpop.f32.mrb[0].mxu0
    %v231 = vadd.f32 %v76, %v230
    %v232 = vpop.f32.mrb[0].mxu0
    %233 = vmatprep.mubr.f32.mxu0 0.0
    %234 = vmatmul.mubr.f32.gmra.mrb[0].mxu0 %v85
    %v235 = vpop.f32.mrb[0].mxu0
    %v236 = vadd.f32 %v76, %v235
    %v237 = vpop.f32.mrb[0].mxu0
    %238 = vdwg.mxu0
    %239 = vmatprep.subr.mxu0 0.0
    %240 = vmatpush1.xpose.msra.mxu0 %v156
    %241 = vmatprep.subr.mxu0 0.0
    %242 = vmatpush1.xpose.msra.mxu0 0.0
    %243 = vmatprep.subr.mxu0 0.0
    %244 = vmatpush1.xpose.msra.mxu0 0.0
    %245 = vmatprep.subr.mxu0 0.0
    %246 = vmatpush1.xpose.msra.mxu0 0.0
    %247 = vmatprep.subr.mxu0 0.0
    %248 = vmatpush1.xpose.msra.mxu0 0.0
    %249 = vmatprep.subr.mxu0 0.0
    %250 = vmatpush1.xpose.msra.mxu0 0.0
    %251 = vmatprep.subr.mxu0 0.0
    %252 = vmatpush1.xpose.msra.mxu0 0.0
    %253 = vmatprep.subr.mxu0 0.0
    %254 = vmatpush1.xpose.msra.mxu0 0.0
    %255 = vmatprep.subr.mxu0 0.0
    %256 = vmatpush1.xpose.msra.mxu0 0.0
    %257 = vmatprep.subr.mxu0 0.0
    %258 = vmatpush1.xpose.msra.mxu0 0.0
    %259 = vmatprep.subr.mxu0 0.0
    %260 = vmatpush1.xpose.msra.mxu0 0.0
    %261 = vmatprep.subr.mxu0 0.0
    %262 = vmatpush1.xpose.msra.mxu0 0.0
    %263 = vmatprep.subr.mxu0 0.0
    %264 = vmatpush1.xpose.msra.mxu0 0.0
    %265 = vmatprep.subr.mxu0 0.0
    %266 = vmatpush1.xpose.msra.mxu0 0.0
    %267 = vmatprep.subr.mxu0 0.0
    %268 = vmatpush1.xpose.msra.mxu0 0.0
    %269 = vmatprep.subr.mxu0 0.0
    %270 = vmatpush1.xpose.msra.mxu0 0.0
    %271 = vmatprep.subr.mxu0 0.0
    %272 = vmatpush1.xpose.msra.mxu0 0.0
    %273 = vmatprep.subr.mxu0 0.0
    %274 = vmatpush1.xpose.msra.mxu0 0.0
    %275 = vmatprep.subr.mxu0 0.0
    %276 = vmatpush1.xpose.msra.mxu0 0.0
    %277 = vmatprep.subr.mxu0 0.0
    %278 = vmatpush1.xpose.msra.mxu0 0.0
    %279 = vmatprep.subr.mxu0 0.0
    %280 = vmatpush1.xpose.msra.mxu0 0.0
    %281 = vmatprep.subr.mxu0 0.0
    %282 = vmatpush1.xpose.msra.mxu0 0.0
    %283 = vmatprep.subr.mxu0 0.0
    %284 = vmatpush1.xpose.msra.mxu0 0.0
    %285 = vmatprep.subr.mxu0 0.0
    %286 = vmatpush1.xpose.msra.mxu0 0.0
    %287 = vmatprep.subr.mxu0 0.0
    %288 = vmatpush1.xpose.msra.mxu0 0.0
    %289 = vmatprep.subr.mxu0 0.0
    %290 = vmatpush1.xpose.msra.mxu0 0.0
    %291 = vmatprep.subr.mxu0 0.0
    %292 = vmatpush1.xpose.msra.mxu0 0.0
    %293 = vmatprep.subr.mxu0 0.0
    %294 = vmatpush1.xpose.msra.mxu0 0.0
    %295 = vmatprep.subr.mxu0 0.0
    %296 = vmatpush1.xpose.msra.mxu0 0.0
    %297 = vmatprep.subr.mxu0 0.0
    %298 = vmatpush1.xpose.msra.mxu0 0.0
    %299 = vmatprep.subr.mxu0 0.0
    %300 = vmatpush1.xpose.msra.mxu0 0.0
    %301 = vmatprep.subr.mxu0 0.0
    %302 = vmatpush1.xpose.msra.mxu0 0.0
    %303 = vmatprep.mubr.f32.mxu0 0.0
    %304 = vmatmul.mubr.f32.gmra.mrb[0].mxu0 %v154
    %v305 = vpop.f32.mrb[0].mxu0
    %v306 = vadd.f32 0.0, %v305
    %v307 = vpop.f32.mrb[0].mxu0
    %308 = vdwg.mxu0
    %309 = vmatprep.subr.mxu0 0.0
    %310 = vmatpush1.xpose.msra.mxu0 %v162
    %311 = vmatprep.subr.mxu0 0.0
    %312 = vmatpush1.xpose.msra.mxu0 0.0
    %313 = vmatprep.subr.mxu0 0.0
    %314 = vmatpush1.xpose.msra.mxu0 0.0
    %315 = vmatprep.subr.mxu0 0.0
    %316 = vmatpush1.xpose.msra.mxu0 0.0
    %317 = vmatprep.subr.mxu0 0.0
    %318 = vmatpush1.xpose.msra.mxu0 0.0
    %319 = vmatprep.subr.mxu0 0.0
    %320 = vmatpush1.xpose.msra.mxu0 0.0
    %321 = vmatprep.subr.mxu0 0.0
    %322 = vmatpush1.xpose.msra.mxu0 0.0
    %323 = vmatprep.subr.mxu0 0.0
    %324 = vmatpush1.xpose.msra.mxu0 0.0
    %325 = vmatprep.subr.mxu0 0.0
    %326 = vmatpush1.xpose.msra.mxu0 0.0
    %327 = vmatprep.subr.mxu0 0.0
    %328 = vmatpush1.xpose.msra.mxu0 0.0
    %329 = vmatprep.subr.mxu0 0.0
    %330 = vmatpush1.xpose.msra.mxu0 0.0
    %331 = vmatprep.subr.mxu0 0.0
    %332 = vmatpush1.xpose.msra.mxu0 0.0
    %333 = vmatprep.subr.mxu0 0.0
    %334 = vmatpush1.xpose.msra.mxu0 0.0
    %335 = vmatprep.subr.mxu0 0.0
    %336 = vmatpush1.xpose.msra.mxu0 0.0
    %337 = vmatprep.subr.mxu0 0.0
    %338 = vmatpush1.xpose.msra.mxu0 0.0
    %339 = vmatprep.subr.mxu0 0.0
    %340 = vmatpush1.xpose.msra.mxu0 0.0
    %341 = vmatprep.subr.mxu0 0.0
    %342 = vmatpush1.xpose.msra.mxu0 0.0
    %343 = vmatprep.subr.mxu0 0.0
    %344 = vmatpush1.xpose.msra.mxu0 0.0
    %345 = vmatprep.subr.mxu0 0.0
    %346 = vmatpush1.xpose.msra.mxu0 0.0
    %347 = vmatprep.subr.mxu0 0.0
    %348 = vmatpush1.xpose.msra.mxu0 0.0
    %349 = vmatprep.subr.mxu0 0.0
    %350 = vmatpush1.xpose.msra.mxu0 0.0
    %351 = vmatprep.subr.mxu0 0.0
    %352 = vmatpush1.xpose.msra.mxu0 0.0
    %353 = vmatprep.subr.mxu0 0.0
    %354 = vmatpush1.xpose.msra.mxu0 0.0
    %355 = vmatprep.subr.mxu0 0.0
    %356 = vmatpush1.xpose.msra.mxu0 0.0
    %357 = vmatprep.subr.mxu0 0.0
    %358 = vmatpush1.xpose.msra.mxu0 0.0
    %359 = vmatprep.subr.mxu0 0.0
    %360 = vmatpush1.xpose.msra.mxu0 0.0
    %361 = vmatprep.subr.mxu0 0.0
    %362 = vmatpush1.xpose.msra.mxu0 0.0
    %363 = vmatprep.subr.mxu0 0.0
    %364 = vmatpush1.xpose.msra.mxu0 0.0
    %365 = vmatprep.subr.mxu0 0.0
    %366 = vmatpush1.xpose.msra.mxu0 0.0
    %367 = vmatprep.subr.mxu0 0.0
    %368 = vmatpush1.xpose.msra.mxu0 0.0
    %369 = vmatprep.subr.mxu0 0.0
    %370 = vmatpush1.xpose.msra.mxu0 0.0
    %371 = vmatprep.subr.mxu0 0.0
    %372 = vmatpush1.xpose.msra.mxu0 0.0
    %373 = vmatprep.mubr.f32.mxu0 0.0
    %374 = vmatmul.mubr.f32.gmra.mrb[0].mxu0 %v160
    %v375 = vpop.f32.mrb[0].mxu0
    %v376 = vadd.f32 0.0, %v375
    %v377 = vpop.f32.mrb[0].mxu0
    %378 = vdwg.mxu0
    %v379 = vmul.f32 %v306, 0.17677669
    %v380 = vmul.f32 %v376, 0.17677669
    %v381 = vld [vmem:[%s3] sm:$0xff]
    %v382 = vadd.f32 %v379, %v381
    %v383 = vadd.f32 %v380, %v381
    %vm384 = vcmask 64512
    %v385 = vsel %vm384, %v382, -inf
    %386 = vmax.xlane.f32.xlu0 %v385
    %v387 = vpop.xlane.xlu0 %386
    %v388 = vsel %vm384, %v383, -inf
    %389 = vmax.xlane.f32.xlu0 %v388
    %v390 = vpop.xlane.xlu0 %389
    %v391 = vsub.f32 %v382, %v387
    %v392 = vsub.f32 %v383, %v390
    %v393 = vmul.f32 %v391, 1.442695
    %v394 = vpow.pop %v393
    %v395 = vmul.f32 %v392, 1.442695
    %v396 = vpow.pop %v395
    %v397 = vsel %vm384, %v394, 0.0
    %398 = vadd.xlane.f32.xlu0 %v397
    %v399 = vpop.xlane.xlu0 %398
    %v400 = vsel %vm384, %v396, 0.0
    %401 = vadd.xlane.f32.xlu0 %v400
    %v402 = vpop.xlane.xlu0 %401
    %v403 = vrcp.pop %v399
    %v404 = vrcp.pop %v402
    %v405 = vmul.f32 %v394, %v403
    %v406 = vmul.f32 %v396, %v404
    %v408 = vsel %vm384, %v405, 0
    %410 = vmatprep.subr.mxu0 0.0
    %411 = vmatpush1.msra.mxu0 %v231
    %412 = vmatprep.subr.mxu0 0.0
    %413 = vmatpush1.msra.mxu0 0.0
    %414 = vmatprep.subr.mxu0 0.0
    %415 = vmatpush1.msra.mxu0 0.0
    %416 = vmatprep.subr.mxu0 0.0
    %417 = vmatpush1.msra.mxu0 0.0
    %418 = vmatprep.subr.mxu0 0.0
    %419 = vmatpush1.msra.mxu0 0.0
    %420 = vmatprep.subr.mxu0 0.0
    %421 = vmatpush1.msra.mxu0 0.0
    %422 = vmatprep.subr.mxu0 0.0
    %423 = vmatpush1.msra.mxu0 0.0
    %424 = vmatprep.subr.mxu0 0.0
    %425 = vmatpush1.msra.mxu0 0.0
    %426 = vmatprep.subr.mxu0 0.0
    %427 = vmatpush1.msra.mxu0 0.0
    %428 = vmatprep.subr.mxu0 0.0
    %429 = vmatpush1.msra.mxu0 0.0
    %430 = vmatprep.subr.mxu0 0.0
    %431 = vmatpush1.msra.mxu0 0.0
    %432 = vmatprep.subr.mxu0 0.0
    %433 = vmatpush1.msra.mxu0 0.0
    %434 = vmatprep.subr.mxu0 0.0
    %435 = vmatpush1.msra.mxu0 0.0
    %436 = vmatprep.subr.mxu0 0.0
    %437 = vmatpush1.msra.mxu0 0.0
    %438 = vmatprep.subr.mxu0 0.0
    %439 = vmatpush1.msra.mxu0 0.0
    %440 = vmatprep.subr.mxu0 0.0
    %441 = vmatpush1.msra.mxu0 0.0
    %442 = vmatprep.subr.mxu0 0.0
    %443 = vmatpush1.msra.mxu0 0.0
    %444 = vmatprep.subr.mxu0 0.0
    %445 = vmatpush1.msra.mxu0 0.0
    %446 = vmatprep.subr.mxu0 0.0
    %447 = vmatpush1.msra.mxu0 0.0
    %448 = vmatprep.subr.mxu0 0.0
    %449 = vmatpush1.msra.mxu0 0.0
    %450 = vmatprep.subr.mxu0 0.0
    %451 = vmatpush1.msra.mxu0 0.0
    %452 = vmatprep.subr.mxu0 0.0
    %453 = vmatpush1.msra.mxu0 0.0
    %454 = vmatprep.subr.mxu0 0.0
    %455 = vmatpush1.msra.mxu0 0.0
    %456 = vmatprep.subr.mxu0 0.0
    %457 = vmatpush1.msra.mxu0 0.0
    %458 = vmatprep.subr.mxu0 0.0
    %459 = vmatpush1.msra.mxu0 0.0
    %460 = vmatprep.subr.mxu0 0.0
    %461 = vmatpush1.msra.mxu0 0.0
    %462 = vmatprep.subr.mxu0 0.0
    %463 = vmatpush1.msra.mxu0 0.0
    %464 = vmatprep.subr.mxu0 0.0
    %465 = vmatpush1.msra.mxu0 0.0
    %466 = vmatprep.subr.mxu0 0.0
    %467 = vmatpush1.msra.mxu0 0.0
    %468 = vmatprep.subr.mxu0 0.0
    %469 = vmatpush1.msra.mxu0 0.0
    %470 = vmatprep.subr.mxu0 0.0
    %471 = vmatpush1.msra.mxu0 0.0
    %472 = vmatprep.subr.mxu0 0.0
    %473 = vmatpush1.msra.mxu0 0.0
    %474 = vmatprep.mubr.f32.mxu0 0.0
    %475 = vmatmul.mubr.f32.gmra.mrb[0].mxu0 %v408
    %v476 = vpop.f32.mrb[0].mxu0
    %v477 = vadd.f32 0.0, %v476
    %v478 = vpop.f32.mrb[0].mxu0
    %479 = vdwg.mxu0
    %v481 = vsel %vm384, %v406, 0
    %483 = vmatprep.subr.mxu0 0.0
    %484 = vmatpush1.msra.mxu0 %v236
    %485 = vmatprep.subr.mxu0 0.0
    %486 = vmatpush1.msra.mxu0 0.0
    %487 = vmatprep.subr.mxu0 0.0
    %488 = vmatpush1.msra.mxu0 0.0
    %489 = vmatprep.subr.mxu0 0.0
    %490 = vmatpush1.msra.mxu0 0.0
    %491 = vmatprep.subr.mxu0 0.0
    %492 = vmatpush1.msra.mxu0 0.0
    %493 = vmatprep.subr.mxu0 0.0
    %494 = vmatpush1.msra.mxu0 0.0
    %495 = vmatprep.subr.mxu0 0.0
    %496 = vmatpush1.msra.mxu0 0.0
    %497 = vmatprep.subr.mxu0 0.0
    %498 = vmatpush1.msra.mxu0 0.0
    %499 = vmatprep.subr.mxu0 0.0
    %500 = vmatpush1.msra.mxu0 0.0
    %501 = vmatprep.subr.mxu0 0.0
    %502 = vmatpush1.msra.mxu0 0.0
    %503 = vmatprep.subr.mxu0 0.0
    %504 = vmatpush1.msra.mxu0 0.0
    %505 = vmatprep.subr.mxu0 0.0
    %506 = vmatpush1.msra.mxu0 0.0
    %507 = vmatprep.subr.mxu0 0.0
    %508 = vmatpush1.msra.mxu0 0.0
    %509 = vmatprep.subr.mxu0 0.0
    %510 = vmatpush1.msra.mxu0 0.0
    %511 = vmatprep.subr.mxu0 0.0
    %512 = vmatpush1.msra.mxu0 0.0
    %513 = vmatprep.subr.mxu0 0.0
    %514 = vmatpush1.msra.mxu0 0.0
    %515 = vmatprep.subr.mxu0 0.0
    %516 = vmatpush1.msra.mxu0 0.0
    %517 = vmatprep.subr.mxu0 0.0
    %518 = vmatpush1.msra.mxu0 0.0
    %519 = vmatprep.subr.mxu0 0.0
    %520 = vmatpush1.msra.mxu0 0.0
    %521 = vmatprep.subr.mxu0 0.0
    %522 = vmatpush1.msra.mxu0 0.0
    %523 = vmatprep.subr.mxu0 0.0
    %524 = vmatpush1.msra.mxu0 0.0
    %525 = vmatprep.subr.mxu0 0.0
    %526 = vmatpush1.msra.mxu0 0.0
    %527 = vmatprep.subr.mxu0 0.0
    %528 = vmatpush1.msra.mxu0 0.0
    %529 = vmatprep.subr.mxu0 0.0
    %530 = vmatpush1.msra.mxu0 0.0
    %531 = vmatprep.subr.mxu0 0.0
    %532 = vmatpush1.msra.mxu0 0.0
    %533 = vmatprep.subr.mxu0 0.0
    %534 = vmatpush1.msra.mxu0 0.0
    %535 = vmatprep.subr.mxu0 0.0
    %536 = vmatpush1.msra.mxu0 0.0
    %537 = vmatprep.subr.mxu0 0.0
    %538 = vmatpush1.msra.mxu0 0.0
    %539 = vmatprep.subr.mxu0 0.0
    %540 = vmatpush1.msra.mxu0 0.0
    %541 = vmatprep.subr.mxu0 0.0
    %542 = vmatpush1.msra.mxu0 0.0
    %543 = vmatprep.subr.mxu0 0.0
    %544 = vmatpush1.msra.mxu0 0.0
    %545 = vmatprep.subr.mxu0 0.0
    %546 = vmatpush1.msra.mxu0 0.0
    %547 = vmatprep.mubr.f32.mxu0 0.0
    %548 = vmatmul.mubr.f32.gmra.mrb[0].mxu0 %v481
    %v549 = vpop.f32.mrb[0].mxu0
    %v550 = vadd.f32 0.0, %v549
    %v551 = vpop.f32.mrb[0].mxu0
    %552 = vdwg.mxu0
    %553 = vst [vmem:[#allocation7] sm:$0xff] %v477
    %554 = vst [vmem:[#allocation7 + $0x8] sm:$0xff] %v550
    %555 = vst.msk [vmem:[#allocation8] sm:$0xff] %vm384, %v405
    %556 = vst.msk [vmem:[#allocation8 + $0x8] sm:$0xff] %vm384, %v406
    // Predicated region
    $region26: #{self_attn_forward.1} parent=1 // pred_check
      _
    $region27: #{self_attn_forward.1} parent=1 // pred_check_branch
      %558 = sbr.rel (0) target = $region29
    $region28: #{self_attn_forward.1} parent=1 // pred_region
      %s560 = ssub.s32 256, 256
      %561 = vsyncadd [#allocation4], %s560
      %s562 = sshll.u32 [#allocation7], 4
      %s563 = int_to_ptr.vmem [resolvable:$true] %s562
      %568 = dma.vmem_to_hbm [thread:$0]  %s563, 256, %s4, [#allocation4], 128, 128, 8
    $region29: #{self_attn_forward.1} parent=1 // pred_fallthru
      _
    // Predicated region
    $region30: #{self_attn_forward.1} parent=1 // pred_check
      _
    $region31: #{self_attn_forward.1} parent=1 // pred_check_branch
      %570 = sbr.rel (0) target = $region33
    $region32: #{self_attn_forward.1} parent=1 // pred_region
      %s572 = ssub.s32 256, 256
      %573 = vsyncadd [#allocation9], %s572
      %s574 = sshll.u32 [#allocation8], 4
      %s575 = int_to_ptr.vmem [resolvable:$true] %s574
      %580 = dma.vmem_to_hbm [thread:$0]  %s575, 256, %s5, [#allocation9], 128, 128, 8
    $region33: #{self_attn_forward.1} parent=1 // pred_fallthru
      _
    // Predicated region
    $region34: #{self_attn_forward.1} parent=1 // pred_check
      _
    $region35: #{self_attn_forward.1} parent=1 // pred_check_branch
      %582 = sbr.rel (0) target = $region37
    $region36: #{self_attn_forward.1} parent=1 // pred_region
      %583 = dma.done [#allocation4], 256
    $region37: #{self_attn_forward.1} parent=1 // pred_fallthru
      _
    // Predicated region
    $region38: #{self_attn_forward.1} parent=1 // pred_check
      _
    $region39: #{self_attn_forward.1} parent=1 // pred_check_branch
      %585 = sbr.rel (0) target = $region41
    $region40: #{self_attn_forward.1} parent=1 // pred_region
      %586 = dma.done [#allocation9], 256
    $region41: #{self_attn_forward.1} parent=1 // pred_fallthru
      _
    %587 = vsyncpa [#allocation3], 1
    %588 = vsyncpa [#allocation6], 1
    %589 = vsyncpa [#allocation4], 1
    %590 = vsyncpa [#allocation9], 1

</llo_original>
